<compile_context>
chip_gen: v5e
topology: v5e:2x2
jax: 0.10.0
libtpu: 0.0.40
codegen_flags: <defaults>
</compile_context>

<pallas_src>
import functools

import numpy as np
import jax
import jax.numpy as jnp
from jax import lax
from jax.experimental import pallas as pl
from jax.experimental.pallas import tpu as pltpu


def _round_up(x, m):
    return ((x + m - 1) // m) * m


def _embed_kernel(left_ref, rend_ref, aligned_ref, amount_ref, seq_ref, out_ref, *,
                  pad_lanes, window, l_pad, rows_per_step):
    """One grid step emits a lane-dense (rows_per_step, pad_lanes) f32 tile."""
    g = pl.program_id(0)
    # Lane-index iota, hoisted out of the per-row loop (shared by all rows).
    lane = lax.broadcasted_iota(jnp.int32, (1, pad_lanes), 1)

    # Statically unrolled row loop; per row: 3-4 SMEM loads, one aligned window
    # load, one XLU lane-rotate, one masked select, one full-lane store.
    for r in range(rows_per_step):
        i = g * rows_per_step + r
        left = left_ref[i]            # first non-zero output lane
        rend = rend_ref[i]            # one past the last non-zero output lane
        amount = amount_ref[i]        # precomputed lane-rotate amount

        if window < l_pad:
            # 128-aligned, always-in-bounds window start (precomputed in wrapper).
            aligned = pl.multiple_of(aligned_ref[i], 128)
            win = seq_ref[:, pl.ds(aligned, window)]      # (1, window) int32
        else:
            # The whole lane-padded stream already is a single window.
            win = seq_ref[...]                            # (1, l_pad == window)

        # rolled[j] = win[(j - amount) mod window] == seq[base + j] for valid j.
        # (If dynamic-shift roll ever fails to lower on a target, fall back to a
        # two-aligned-load + select combine.)
        rolled = pltpu.roll(win, amount, axis=1)
        vals = rolled[:, :pad_lanes]                      # (1, pad_lanes) int32

        valid = (lane >= left) & (lane < rend)
        out_ref[pl.ds(r, 1), :] = jnp.where(valid, vals, 0).astype(out_ref.dtype)


def embed_block(seq, ptr, pad_len, rows_per_step=64):
    """Pallas implementation of EmbedBlock.forward((seq, ptr)) -> (n_rows, 1, pad_len) f32."""
    ptr = jnp.asarray(ptr, jnp.int32)
    seq = jnp.asarray(seq)

    n_rows = int(ptr.shape[0]) - 2
    l_seq = int(seq.shape[0])
    if n_rows <= 0:
        return jnp.zeros((max(n_rows, 0), 1, pad_len), jnp.float32)

    pad_lanes = _round_up(max(pad_len, 1), 128)   # lane-dense output width
    window = pad_lanes + 128                      # aligned gather window width
    l_pad = max(_round_up(l_seq, 128), window)    # staged sequence row width

    # Keep >= 2 grid blocks when n_rows allows it (v7x: 2 TensorCores share the
    # "parallel" axis), but never below 8 rows (one sublane tile) per block.
    half = _round_up(max((n_rows + 1) // 2, 1), 8)
    rows_per_step = max(8, min(rows_per_step, half))
    grid_steps = (n_rows + rows_per_step - 1) // rows_per_step
    n_rows_grid = grid_steps * rows_per_step

    # Stage the token stream as one lane-padded int32 row (padding lanes are never
    # selected by the validity mask).
    seq_row = jnp.zeros((1, l_pad), jnp.int32).at[0, :l_seq].set(seq.astype(jnp.int32))

    # Per-row scalars computed once here (vectorized), so the kernel's scalar unit
    # only does SMEM loads per row (no in-kernel div/mod chains).
    starts = ptr[:n_rows] + 1                    # first kept token of segment i
    ends = ptr[1:n_rows + 1] - 1                 # one past the last kept token
    lengths = ends - starts
    lefts = (pad_len - lengths) // 2             # zeros on the left (extra zero -> right)
    bases = starts - lefts                       # seq index that feeds output lane 0
    rends = lefts + lengths
    if window < l_pad:
        aligneds = jnp.clip((bases // 128) * 128, 0, l_pad - window)
    else:
        aligneds = jnp.zeros_like(bases)
    amounts = jnp.mod(aligneds + window - bases, window)

    def _pad_rows(x):
        x = x.astype(jnp.int32)
        if n_rows_grid > n_rows:
            # Padding rows: left = rend = 0 -> all-false mask -> zeros (and those
            # rows are out of bounds of the output, so Pallas drops the writes).
            x = jnp.concatenate([x, jnp.zeros((n_rows_grid - n_rows,), jnp.int32)])
        return x

    lefts, rends, aligneds, amounts = map(_pad_rows, (lefts, rends, aligneds, amounts))

    # Explicit VMEM budget: seq row is 8x sublane-padded and double-buffered
    # (~64 B/token effective), plus the double-buffered output tile.
    vmem_bytes = 2 * 8 * l_pad * 4 + 2 * rows_per_step * pad_lanes * 4
    vmem_limit = min(max(2 * vmem_bytes + (4 << 20), 16 << 20), 64 << 20)
    # TODO(synk): for multi-100K-token streams, move the seq row to
    # memory_space=pl.ANY + manual windowed DMA instead of keeping it VMEM-resident.

    kernel = functools.partial(
        _embed_kernel, pad_lanes=pad_lanes, window=window,
        l_pad=l_pad, rows_per_step=rows_per_step)

    grid_spec = pltpu.PrefetchScalarGridSpec(
        num_scalar_prefetch=4,                   # lefts, rends, aligneds, amounts -> SMEM
        grid=(grid_steps,),
        in_specs=[pl.BlockSpec((1, l_pad),
                               lambda g, lft, rnd, alg, amt: (0, 0))],
        out_specs=pl.BlockSpec((rows_per_step, pad_lanes),
                               lambda g, lft, rnd, alg, amt: (g, 0)),
    )

    out2d = pl.pallas_call(
        kernel,
        out_shape=jax.ShapeDtypeStruct((n_rows, pad_lanes), jnp.float32),
        grid_spec=grid_spec,
        compiler_params=pltpu.CompilerParams(
            dimension_semantics=("parallel",),
            vmem_limit_bytes=vmem_limit),
    )(lefts, rends, aligneds, amounts, seq_row)

    if pad_lanes != pad_len:
        # TODO(synk): non-128-multiple pad_len pays one extra HBM copy for this lane slice.
        out2d = out2d[:, :pad_len]
    # Unit-dim insert is a layout-compatible reshape (no extra HBM copy).
    return out2d[:, None, :]


def _numpy_reference(seq, ptr, pad):
    """Mirror of the PyTorch EmbedBlock.forward (without torch)."""
    rows = []
    for i in range(len(ptr) - 2):
        s = seq[ptr[i] + 1: ptr[i + 1] - 1]
        zero_pad = pad - len(s)
        left = zero_pad // 2
        right = zero_pad - left  # odd pad -> extra zero on the right
        s = np.concatenate(
            [np.zeros(left, seq.dtype), s, np.zeros(right, seq.dtype)])
        rows.append(s)
    return np.asarray(rows, dtype=np.float32)[:, None, :]


if __name__ == "__main__":
    key = jax.random.PRNGKey(0)

    # Case 1: small ragged example (3 rows); pad_len=128 exercises the zero-copy
    # lane-dense output path, pad_len=32 exercises the lane-slice path.
    ptr = jnp.array([0, 7, 19, 28, 33], dtype=jnp.int32)
    seq = jax.random.randint(key, (33,), minval=1, maxval=50, dtype=jnp.int32)
    for pad_len in (128, 32):
        out = jax.block_until_ready(embed_block(seq, ptr, pad_len))
        exp = _numpy_reference(np.asarray(seq), np.asarray(ptr), pad_len)
        assert out.shape == exp.shape, (out.shape, exp.shape)
        np.testing.assert_allclose(np.asarray(out), exp, rtol=0, atol=0)

    # Case 2: longer stream -> exercises the 128-aligned dynamic-window gather and
    # a partial output block (5 rows against an 8-row output block).
    seq2 = jax.random.randint(jax.random.PRNGKey(0), (700,),
                              minval=1, maxval=1000, dtype=jnp.int32)
    ptr2 = jnp.array([0, 100, 230, 360, 480, 600, 700], dtype=jnp.int32)
    out2 = jax.block_until_ready(embed_block(seq2, ptr2, 128))
    exp2 = _numpy_reference(np.asarray(seq2), np.asarray(ptr2), 128)
    assert out2.shape == exp2.shape, (out2.shape, exp2.shape)
    np.testing.assert_allclose(np.asarray(out2), exp2, rtol=0, atol=0)

    print("KERNEL_OK")
</pallas_src>

<mosaic_0001>
module attributes {stable_mosaic.version = 11 : i64} {
  func.func @_embed_kernel(%arg0: i32, %arg1: memref<8xi32, #tpu.memory_space<smem>>, %arg2: memref<8xi32, #tpu.memory_space<smem>>, %arg3: memref<8xi32, #tpu.memory_space<smem>>, %arg4: memref<8xi32, #tpu.memory_space<smem>>, %arg5: memref<1x256xi32, #tpu.memory_space<vmem>>, %arg6: memref<8x128xf32, #tpu.memory_space<vmem>>) attributes {dimension_semantics = [#tpu.dimension_semantics<parallel>], iteration_bounds = array<i64: 1>, scalar_prefetch = 4 : i64, scratch_operands = 0 : i64, tpu.core_type = #tpu.core_type<tc>, window_params = [{pipeline_mode = #tpu.pipeline_mode<synchronous>, transform_indices = @transform_0, window_bounds = array<i64: 1, 256>}, {transform_indices = @transform_1, window_bounds = array<i64: 8, 128>}]} {
    %0 = tpu.iota {dimensions = array<i32: 1>} : vector<1x128xi32>
    %c8_i32 = arith.constant 8 : i32
    %1 = arith.muli %arg0, %c8_i32 : i32
    %c0_i32 = arith.constant 0 : i32
    %2 = arith.addi %1, %c0_i32 : i32
    %3 = arith.index_cast %2 : i32 to index
    %4 = memref.load %arg1[%3] : memref<8xi32, #tpu.memory_space<smem>>
    %5 = arith.index_cast %2 : i32 to index
    %6 = memref.load %arg2[%5] : memref<8xi32, #tpu.memory_space<smem>>
    %7 = arith.index_cast %2 : i32 to index
    %8 = memref.load %arg4[%7] : memref<8xi32, #tpu.memory_space<smem>>
    %c0 = arith.constant 0 : index
    %c0_0 = arith.constant 0 : index
    %9 = vector.load %arg5[%c0, %c0_0] : memref<1x256xi32, #tpu.memory_space<vmem>>, vector<1x256xi32>
    %10 = tpu.dynamic_rotate %9 by %8 dim 1 : vector<1x256xi32>, i32 -> vector<1x256xi32>
    %11 = vector.extract_strided_slice %10 {offsets = [0, 0], sizes = [1, 128], strides = [1, 1]} : vector<1x256xi32> to vector<1x128xi32>
    %12 = vector.broadcast %4 : i32 to vector<1x128xi32>
    %13 = arith.cmpi sge, %0, %12 : vector<1x128xi32>
    %14 = vector.broadcast %6 : i32 to vector<1x128xi32>
    %15 = arith.cmpi slt, %0, %14 : vector<1x128xi32>
    %16 = arith.andi %13, %15 : vector<1x128xi1>
    %c0_i32_1 = arith.constant 0 : i32
    %17 = vector.broadcast %c0_i32_1 : i32 to vector<1x128xi32>
    %18 = arith.select %16, %11, %17 : vector<1x128xi1>, vector<1x128xi32>
    %19 = arith.sitofp %18 : vector<1x128xi32> to vector<1x128xf32>
    %c0_2 = arith.constant 0 : index
    %c0_3 = arith.constant 0 : index
    %20 = vector.load %arg6[%c0_2, %c0_3] : memref<8x128xf32, #tpu.memory_space<vmem>>, vector<1x128xf32>
    tpu.vector_store %arg6[%c0_2, %c0_3], %19 {strides = array<i32>} : memref<8x128xf32, #tpu.memory_space<vmem>>, vector<1x128xf32>,
    %c8_i32_4 = arith.constant 8 : i32
    %21 = arith.muli %arg0, %c8_i32_4 : i32
    %c1_i32 = arith.constant 1 : i32
    %22 = arith.addi %21, %c1_i32 : i32
    %23 = arith.index_cast %22 : i32 to index
    %24 = memref.load %arg1[%23] : memref<8xi32, #tpu.memory_space<smem>>
    %25 = arith.index_cast %22 : i32 to index
    %26 = memref.load %arg2[%25] : memref<8xi32, #tpu.memory_space<smem>>
    %27 = arith.index_cast %22 : i32 to index
    %28 = memref.load %arg4[%27] : memref<8xi32, #tpu.memory_space<smem>>
    %c0_5 = arith.constant 0 : index
    %c0_6 = arith.constant 0 : index
    %29 = vector.load %arg5[%c0_5, %c0_6] : memref<1x256xi32, #tpu.memory_space<vmem>>, vector<1x256xi32>
    %30 = tpu.dynamic_rotate %29 by %28 dim 1 : vector<1x256xi32>, i32 -> vector<1x256xi32>
    %31 = vector.extract_strided_slice %30 {offsets = [0, 0], sizes = [1, 128], strides = [1, 1]} : vector<1x256xi32> to vector<1x128xi32>
    %32 = vector.broadcast %24 : i32 to vector<1x128xi32>
    %33 = arith.cmpi sge, %0, %32 : vector<1x128xi32>
    %34 = vector.broadcast %26 : i32 to vector<1x128xi32>
    %35 = arith.cmpi slt, %0, %34 : vector<1x128xi32>
    %36 = arith.andi %33, %35 : vector<1x128xi1>
    %c0_i32_7 = arith.constant 0 : i32
    %37 = vector.broadcast %c0_i32_7 : i32 to vector<1x128xi32>
    %38 = arith.select %36, %31, %37 : vector<1x128xi1>, vector<1x128xi32>
    %39 = arith.sitofp %38 : vector<1x128xi32> to vector<1x128xf32>
    %c1 = arith.constant 1 : index
    %c0_8 = arith.constant 0 : index
    %40 = vector.load %arg6[%c1, %c0_8] : memref<8x128xf32, #tpu.memory_space<vmem>>, vector<1x128xf32>
    tpu.vector_store %arg6[%c1, %c0_8], %39 {strides = array<i32>} : memref<8x128xf32, #tpu.memory_space<vmem>>, vector<1x128xf32>,
    %c8_i32_9 = arith.constant 8 : i32
    %41 = arith.muli %arg0, %c8_i32_9 : i32
    %c2_i32 = arith.constant 2 : i32
    %42 = arith.addi %41, %c2_i32 : i32
    %43 = arith.index_cast %42 : i32 to index
    %44 = memref.load %arg1[%43] : memref<8xi32, #tpu.memory_space<smem>>
    %45 = arith.index_cast %42 : i32 to index
    %46 = memref.load %arg2[%45] : memref<8xi32, #tpu.memory_space<smem>>
    %47 = arith.index_cast %42 : i32 to index
    %48 = memref.load %arg4[%47] : memref<8xi32, #tpu.memory_space<smem>>
    %c0_10 = arith.constant 0 : index
    %c0_11 = arith.constant 0 : index
    %49 = vector.load %arg5[%c0_10, %c0_11] : memref<1x256xi32, #tpu.memory_space<vmem>>, vector<1x256xi32>
    %50 = tpu.dynamic_rotate %49 by %48 dim 1 : vector<1x256xi32>, i32 -> vector<1x256xi32>
    %51 = vector.extract_strided_slice %50 {offsets = [0, 0], sizes = [1, 128], strides = [1, 1]} : vector<1x256xi32> to vector<1x128xi32>
    %52 = vector.broadcast %44 : i32 to vector<1x128xi32>
    %53 = arith.cmpi sge, %0, %52 : vector<1x128xi32>
    %54 = vector.broadcast %46 : i32 to vector<1x128xi32>
    %55 = arith.cmpi slt, %0, %54 : vector<1x128xi32>
    %56 = arith.andi %53, %55 : vector<1x128xi1>
    %c0_i32_12 = arith.constant 0 : i32
    %57 = vector.broadcast %c0_i32_12 : i32 to vector<1x128xi32>
    %58 = arith.select %56, %51, %57 : vector<1x128xi1>, vector<1x128xi32>
    %59 = arith.sitofp %58 : vector<1x128xi32> to vector<1x128xf32>
    %c2 = arith.constant 2 : index
    %c0_13 = arith.constant 0 : index
    %60 = vector.load %arg6[%c2, %c0_13] : memref<8x128xf32, #tpu.memory_space<vmem>>, vector<1x128xf32>
    tpu.vector_store %arg6[%c2, %c0_13], %59 {strides = array<i32>} : memref<8x128xf32, #tpu.memory_space<vmem>>, vector<1x128xf32>,
    %c8_i32_14 = arith.constant 8 : i32
    %61 = arith.muli %arg0, %c8_i32_14 : i32
    %c3_i32 = arith.constant 3 : i32
    %62 = arith.addi %61, %c3_i32 : i32
    %63 = arith.index_cast %62 : i32 to index
    %64 = memref.load %arg1[%63] : memref<8xi32, #tpu.memory_space<smem>>
    %65 = arith.index_cast %62 : i32 to index
    %66 = memref.load %arg2[%65] : memref<8xi32, #tpu.memory_space<smem>>
    %67 = arith.index_cast %62 : i32 to index
    %68 = memref.load %arg4[%67] : memref<8xi32, #tpu.memory_space<smem>>
    %c0_15 = arith.constant 0 : index
    %c0_16 = arith.constant 0 : index
    %69 = vector.load %arg5[%c0_15, %c0_16] : memref<1x256xi32, #tpu.memory_space<vmem>>, vector<1x256xi32>
    %70 = tpu.dynamic_rotate %69 by %68 dim 1 : vector<1x256xi32>, i32 -> vector<1x256xi32>
    %71 = vector.extract_strided_slice %70 {offsets = [0, 0], sizes = [1, 128], strides = [1, 1]} : vector<1x256xi32> to vector<1x128xi32>
    %72 = vector.broadcast %64 : i32 to vector<1x128xi32>
    %73 = arith.cmpi sge, %0, %72 : vector<1x128xi32>
    %74 = vector.broadcast %66 : i32 to vector<1x128xi32>
    %75 = arith.cmpi slt, %0, %74 : vector<1x128xi32>
    %76 = arith.andi %73, %75 : vector<1x128xi1>
    %c0_i32_17 = arith.constant 0 : i32
    %77 = vector.broadcast %c0_i32_17 : i32 to vector<1x128xi32>
    %78 = arith.select %76, %71, %77 : vector<1x128xi1>, vector<1x128xi32>
    %79 = arith.sitofp %78 : vector<1x128xi32> to vector<1x128xf32>
    %c3 = arith.constant 3 : index
    %c0_18 = arith.constant 0 : index
    %80 = vector.load %arg6[%c3, %c0_18] : memref<8x128xf32, #tpu.memory_space<vmem>>, vector<1x128xf32>
    tpu.vector_store %arg6[%c3, %c0_18], %79 {strides = array<i32>} : memref<8x128xf32, #tpu.memory_space<vmem>>, vector<1x128xf32>,
    %c8_i32_19 = arith.constant 8 : i32
    %81 = arith.muli %arg0, %c8_i32_19 : i32
    %c4_i32 = arith.constant 4 : i32
    %82 = arith.addi %81, %c4_i32 : i32
    %83 = arith.index_cast %82 : i32 to index
    %84 = memref.load %arg1[%83] : memref<8xi32, #tpu.memory_space<smem>>
    %85 = arith.index_cast %82 : i32 to index
    %86 = memref.load %arg2[%85] : memref<8xi32, #tpu.memory_space<smem>>
    %87 = arith.index_cast %82 : i32 to index
    %88 = memref.load %arg4[%87] : memref<8xi32, #tpu.memory_space<smem>>
    %c0_20 = arith.constant 0 : index
    %c0_21 = arith.constant 0 : index
    %89 = vector.load %arg5[%c0_20, %c0_21] : memref<1x256xi32, #tpu.memory_space<vmem>>, vector<1x256xi32>
    %90 = tpu.dynamic_rotate %89 by %88 dim 1 : vector<1x256xi32>, i32 -> vector<1x256xi32>
    %91 = vector.extract_strided_slice %90 {offsets = [0, 0], sizes = [1, 128], strides = [1, 1]} : vector<1x256xi32> to vector<1x128xi32>
    %92 = vector.broadcast %84 : i32 to vector<1x128xi32>
    %93 = arith.cmpi sge, %0, %92 : vector<1x128xi32>
    %94 = vector.broadcast %86 : i32 to vector<1x128xi32>
    %95 = arith.cmpi slt, %0, %94 : vector<1x128xi32>
    %96 = arith.andi %93, %95 : vector<1x128xi1>
    %c0_i32_22 = arith.constant 0 : i32
    %97 = vector.broadcast %c0_i32_22 : i32 to vector<1x128xi32>
    %98 = arith.select %96, %91, %97 : vector<1x128xi1>, vector<1x128xi32>
    %99 = arith.sitofp %98 : vector<1x128xi32> to vector<1x128xf32>
    %c4 = arith.constant 4 : index
    %c0_23 = arith.constant 0 : index
    %100 = vector.load %arg6[%c4, %c0_23] : memref<8x128xf32, #tpu.memory_space<vmem>>, vector<1x128xf32>
    tpu.vector_store %arg6[%c4, %c0_23], %99 {strides = array<i32>} : memref<8x128xf32, #tpu.memory_space<vmem>>, vector<1x128xf32>,
    %c8_i32_24 = arith.constant 8 : i32
    %101 = arith.muli %arg0, %c8_i32_24 : i32
    %c5_i32 = arith.constant 5 : i32
    %102 = arith.addi %101, %c5_i32 : i32
    %103 = arith.index_cast %102 : i32 to index
    %104 = memref.load %arg1[%103] : memref<8xi32, #tpu.memory_space<smem>>
    %105 = arith.index_cast %102 : i32 to index
    %106 = memref.load %arg2[%105] : memref<8xi32, #tpu.memory_space<smem>>
    %107 = arith.index_cast %102 : i32 to index
    %108 = memref.load %arg4[%107] : memref<8xi32, #tpu.memory_space<smem>>
    %c0_25 = arith.constant 0 : index
    %c0_26 = arith.constant 0 : index
    %109 = vector.load %arg5[%c0_25, %c0_26] : memref<1x256xi32, #tpu.memory_space<vmem>>, vector<1x256xi32>
    %110 = tpu.dynamic_rotate %109 by %108 dim 1 : vector<1x256xi32>, i32 -> vector<1x256xi32>
    %111 = vector.extract_strided_slice %110 {offsets = [0, 0], sizes = [1, 128], strides = [1, 1]} : vector<1x256xi32> to vector<1x128xi32>
    %112 = vector.broadcast %104 : i32 to vector<1x128xi32>
    %113 = arith.cmpi sge, %0, %112 : vector<1x128xi32>
    %114 = vector.broadcast %106 : i32 to vector<1x128xi32>
    %115 = arith.cmpi slt, %0, %114 : vector<1x128xi32>
    %116 = arith.andi %113, %115 : vector<1x128xi1>
    %c0_i32_27 = arith.constant 0 : i32
    %117 = vector.broadcast %c0_i32_27 : i32 to vector<1x128xi32>
    %118 = arith.select %116, %111, %117 : vector<1x128xi1>, vector<1x128xi32>
    %119 = arith.sitofp %118 : vector<1x128xi32> to vector<1x128xf32>
    %c5 = arith.constant 5 : index
    %c0_28 = arith.constant 0 : index
    %120 = vector.load %arg6[%c5, %c0_28] : memref<8x128xf32, #tpu.memory_space<vmem>>, vector<1x128xf32>
    tpu.vector_store %arg6[%c5, %c0_28], %119 {strides = array<i32>} : memref<8x128xf32, #tpu.memory_space<vmem>>, vector<1x128xf32>,
    %c8_i32_29 = arith.constant 8 : i32
    %121 = arith.muli %arg0, %c8_i32_29 : i32
    %c6_i32 = arith.constant 6 : i32
    %122 = arith.addi %121, %c6_i32 : i32
    %123 = arith.index_cast %122 : i32 to index
    %124 = memref.load %arg1[%123] : memref<8xi32, #tpu.memory_space<smem>>
    %125 = arith.index_cast %122 : i32 to index
    %126 = memref.load %arg2[%125] : memref<8xi32, #tpu.memory_space<smem>>
    %127 = arith.index_cast %122 : i32 to index
    %128 = memref.load %arg4[%127] : memref<8xi32, #tpu.memory_space<smem>>
    %c0_30 = arith.constant 0 : index
    %c0_31 = arith.constant 0 : index
    %129 = vector.load %arg5[%c0_30, %c0_31] : memref<1x256xi32, #tpu.memory_space<vmem>>, vector<1x256xi32>
    %130 = tpu.dynamic_rotate %129 by %128 dim 1 : vector<1x256xi32>, i32 -> vector<1x256xi32>
    %131 = vector.extract_strided_slice %130 {offsets = [0, 0], sizes = [1, 128], strides = [1, 1]} : vector<1x256xi32> to vector<1x128xi32>
    %132 = vector.broadcast %124 : i32 to vector<1x128xi32>
    %133 = arith.cmpi sge, %0, %132 : vector<1x128xi32>
    %134 = vector.broadcast %126 : i32 to vector<1x128xi32>
    %135 = arith.cmpi slt, %0, %134 : vector<1x128xi32>
    %136 = arith.andi %133, %135 : vector<1x128xi1>
    %c0_i32_32 = arith.constant 0 : i32
    %137 = vector.broadcast %c0_i32_32 : i32 to vector<1x128xi32>
    %138 = arith.select %136, %131, %137 : vector<1x128xi1>, vector<1x128xi32>
    %139 = arith.sitofp %138 : vector<1x128xi32> to vector<1x128xf32>
    %c6 = arith.constant 6 : index
    %c0_33 = arith.constant 0 : index
    %140 = vector.load %arg6[%c6, %c0_33] : memref<8x128xf32, #tpu.memory_space<vmem>>, vector<1x128xf32>
    tpu.vector_store %arg6[%c6, %c0_33], %139 {strides = array<i32>} : memref<8x128xf32, #tpu.memory_space<vmem>>, vector<1x128xf32>,
    %c8_i32_34 = arith.constant 8 : i32
    %141 = arith.muli %arg0, %c8_i32_34 : i32
    %c7_i32 = arith.constant 7 : i32
    %142 = arith.addi %141, %c7_i32 : i32
    %143 = arith.index_cast %142 : i32 to index
    %144 = memref.load %arg1[%143] : memref<8xi32, #tpu.memory_space<smem>>
    %145 = arith.index_cast %142 : i32 to index
    %146 = memref.load %arg2[%145] : memref<8xi32, #tpu.memory_space<smem>>
    %147 = arith.index_cast %142 : i32 to index
    %148 = memref.load %arg4[%147] : memref<8xi32, #tpu.memory_space<smem>>
    %c0_35 = arith.constant 0 : index
    %c0_36 = arith.constant 0 : index
    %149 = vector.load %arg5[%c0_35, %c0_36] : memref<1x256xi32, #tpu.memory_space<vmem>>, vector<1x256xi32>
    %150 = tpu.dynamic_rotate %149 by %148 dim 1 : vector<1x256xi32>, i32 -> vector<1x256xi32>
    %151 = vector.extract_strided_slice %150 {offsets = [0, 0], sizes = [1, 128], strides = [1, 1]} : vector<1x256xi32> to vector<1x128xi32>
    %152 = vector.broadcast %144 : i32 to vector<1x128xi32>
    %153 = arith.cmpi sge, %0, %152 : vector<1x128xi32>
    %154 = vector.broadcast %146 : i32 to vector<1x128xi32>
    %155 = arith.cmpi slt, %0, %154 : vector<1x128xi32>
    %156 = arith.andi %153, %155 : vector<1x128xi1>
    %c0_i32_37 = arith.constant 0 : i32
    %157 = vector.broadcast %c0_i32_37 : i32 to vector<1x128xi32>
    %158 = arith.select %156, %151, %157 : vector<1x128xi1>, vector<1x128xi32>
    %159 = arith.sitofp %158 : vector<1x128xi32> to vector<1x128xf32>
    %c7 = arith.constant 7 : index
    %c0_38 = arith.constant 0 : index
    %160 = vector.load %arg6[%c7, %c0_38] : memref<8x128xf32, #tpu.memory_space<vmem>>, vector<1x128xf32>
    tpu.vector_store %arg6[%c7, %c0_38], %159 {strides = array<i32>} : memref<8x128xf32, #tpu.memory_space<vmem>>, vector<1x128xf32>,
    return
  }
  func.func @transform_0(%arg0: i32, %arg1: memref<8xi32, #tpu.memory_space<smem>>, %arg2: memref<8xi32, #tpu.memory_space<smem>>, %arg3: memref<8xi32, #tpu.memory_space<smem>>, %arg4: memref<8xi32, #tpu.memory_space<smem>>) -> (i32, i32) {
    %c0_i32 = arith.constant 0 : i32
    %c0_i32_0 = arith.constant 0 : i32
    %c0_i32_1 = arith.constant 0 : i32
    return %c0_i32, %c0_i32_0 : i32, i32
  }
  func.func @transform_1(%arg0: i32, %arg1: memref<8xi32, #tpu.memory_space<smem>>, %arg2: memref<8xi32, #tpu.memory_space<smem>>, %arg3: memref<8xi32, #tpu.memory_space<smem>>, %arg4: memref<8xi32, #tpu.memory_space<smem>>) -> (i32, i32) {
    %c0_i32 = arith.constant 0 : i32
    %c0_i32_0 = arith.constant 0 : i32
    return %arg0, %c0_i32 : i32, i32
  }
}

</mosaic_0001>

<llo_original>
// kernel: tpu_custom_call.1
$region0: #{tpu_custom_call.1}
  #allocation0 [shape = 'u32[]', space=smem, size = 0x4, offset = 0x4, fixed_abs, tag = 'smem constant byte address 0x4 - core index']
  #allocation1 [shape = 'u32[72,128]{1,0:T(1,128)}', space=vmem, size = 0x9000, scoped, tag = 'internal scratch']
  #allocation2 [shape = 's32[1]{0}', space=sflag, size = 0x4, scoped, tag = 'scoped memory for tpu_custom_call.1']
  #allocation3 [shape = 'u8[512]{0}', space=smem, size = 0x200, scoped, tag = 'prefetched SMEM operand 0']
  #allocation4 [shape = 'u8[512]{0}', space=smem, size = 0x200, scoped, tag = 'prefetched SMEM operand 1']
  #allocation5 [shape = 'u8[512]{0}', space=smem, size = 0x200, scoped, tag = 'prefetched SMEM operand 2']
  #allocation6 [shape = 'u8[512]{0}', space=smem, size = 0x200, scoped, tag = 'prefetched SMEM operand 3']
  %s0 = inlined_call_operand.hbm [shape: s32[8], index: 0, kind: input, shape index: {}]
  %s1 = inlined_call_operand.hbm [shape: s32[8], index: 1, kind: input, shape index: {}]
  %s2 = inlined_call_operand.vmem [shape: s32[8], index: 2, kind: input, shape index: {}]
  %s3 = inlined_call_operand.hbm [shape: s32[8], index: 3, kind: input, shape index: {}]
  %s4 = inlined_call_operand.vmem [shape: s32[1,256], index: 4, kind: input, shape index: {}]
  %s5 = inlined_call_operand.hbm [shape: f32[3,128], index: 5, kind: output, shape index: {}]
  %s6 = sld [smem:[#allocation0]]
  $region14: #{tpu_custom_call.1} parent=0
    _
  %s8 = ssub.s32 1, %s6
  %s9 = scalar_select 0, %s8, %s6
  %s11 = sshll.u32 %s0, 4
  %s12 = int_to_ptr.hbm [resolvable:$true] %s11
  %14 = dma.hbm_to_smem %s12, 16, [#allocation3], [#allocation2]
  %s16 = sshll.u32 %s1, 4
  %s17 = int_to_ptr.hbm [resolvable:$true] %s16
  %19 = dma.hbm_to_smem %s17, 16, [#allocation4], [#allocation2]
  %s21 = sshll.u32 %s2, 4
  %s22 = int_to_ptr.vmem [resolvable:$true] %s21
  %24 = dma.vmem_to_smem %s22, 16, [#allocation5], [#allocation2]
  %s26 = sshll.u32 %s3, 4
  %s27 = int_to_ptr.hbm [resolvable:$true] %s26
  %29 = dma.hbm_to_smem %s27, 16, [#allocation6], [#allocation2]
  %31 = dma.done [#allocation2], 64
  %32 = sfence
  $region1: #{tpu_custom_call.1} parent=0
    #allocation7 [shape = 'u8[4096]{0}', space=vmem, size = 0x1000, scoped, tag = 'output window, operand 0, single buffered']
    #allocation8 [shape = 's32[1]{0}', space=sflag, size = 0x4, scoped, tag = 'scoped memory for tpu_custom_call.1']
    %33 = vsyncpa [#allocation8], 0
    // Predicated region
    $region2: #{tpu_custom_call.1} parent=1 // pred_check
      _
    $region3: #{tpu_custom_call.1} parent=1 // pred_check_branch
      %35 = sbr.rel (0) target = $region5
    $region4: #{tpu_custom_call.1} parent=1 // pred_region
      _
    $region5: #{tpu_custom_call.1} parent=1 // pred_fallthru
      _
    %v36 = vlaneseq
    %v37 = vand.u32 %v36, 127
    %s38 = smul.u32 0, 8
    %s39 = sld [smem:[#allocation3 + %s38]]
    %s40 = sld [smem:[#allocation4 + %s38]]
    %s41 = sld [smem:[#allocation6 + %s38]]
    %v42 = vld [vmem:[%s4] sm:$0x3]
    %v43 = vperm.slane %v42, 0
    %v44 = vperm.slane %v42, 1
    %s45 = sand.u32 %s41, 255
    %s46 = sand.u32 %s45, 127
    %s47 = sshrl.u32 %s45, 7
    %48 = vrot.lane.b32.xlu0 %v43, %s46
    %v49 = vpop.permute.xlu0 %48
    %50 = vrot.lane.b32.xlu0 %v44, %s46
    %v51 = vpop.permute.xlu0 %50
    %v52 = vstv %s46
    %vm53 = vcmp.lt.s32.totalorder %v37, %v52
    %v54 = vsel %vm53, %v49, %v51
    %v55 = vsel %vm53, %v51, %v49
    %s56 = sand.u32 %s47, 1
    %v57 = vstv %s56
    %vm58 = vcmp.ne.s32.totalorder %v57, 0
    %v59 = vsel %vm58, %v54, %v55
    %v60 = vstv %s39
    %vm61 = vcmp.ge.s32.totalorder %v37, %v60
    %v62 = vstv %s40
    %vm63 = vcmp.lt.s32.totalorder %v37, %v62
    %vm64 = vmand %vm61, %vm63
    %v65 = vsel %vm64, %v59, 0
    %v66 = vcvt.s32.f32 %v65
    %67 = vst [vmem:[#allocation7] sm:$0x1] %v66
    %s68 = sadd.s32 %s38, 1
    %s69 = sld [smem:[#allocation3 + %s68]]
    %s70 = sld [smem:[#allocation4 + %s68]]
    %s71 = sld [smem:[#allocation6 + %s68]]
    %v72 = vld [vmem:[%s4] sm:$0x3]
    %v73 = vperm.slane %v72, 0
    %v74 = vperm.slane %v72, 1
    %s75 = sand.u32 %s71, 255
    %s76 = sand.u32 %s75, 127
    %s77 = sshrl.u32 %s75, 7
    %78 = vrot.lane.b32.xlu0 %v73, %s76
    %v79 = vpop.permute.xlu0 %78
    %80 = vrot.lane.b32.xlu0 %v74, %s76
    %v81 = vpop.permute.xlu0 %80
    %v82 = vstv %s76
    %vm83 = vcmp.lt.s32.totalorder %v37, %v82
    %v84 = vsel %vm83, %v79, %v81
    %v85 = vsel %vm83, %v81, %v79
    %s86 = sand.u32 %s77, 1
    %v87 = vstv %s86
    %vm88 = vcmp.ne.s32.totalorder %v87, 0
    %v89 = vsel %vm88, %v84, %v85
    %v90 = vstv %s69
    %vm91 = vcmp.ge.s32.totalorder %v37, %v90
    %v92 = vstv %s70
    %vm93 = vcmp.lt.s32.totalorder %v37, %v92
    %vm94 = vmand %vm91, %vm93
    %v95 = vsel %vm94, %v89, 0
    %v96 = vcvt.s32.f32 %v95
    %97 = vst [vmem:[#allocation7 + $0x1] sm:$0x1] %v96
    %s98 = sadd.s32 %s38, 2
    %s99 = sld [smem:[#allocation3 + %s98]]
    %s100 = sld [smem:[#allocation4 + %s98]]
    %s101 = sld [smem:[#allocation6 + %s98]]
    %v102 = vld [vmem:[%s4] sm:$0x3]
    %v103 = vperm.slane %v102, 0
    %v104 = vperm.slane %v102, 1
    %s105 = sand.u32 %s101, 255
    %s106 = sand.u32 %s105, 127
    %s107 = sshrl.u32 %s105, 7
    %108 = vrot.lane.b32.xlu0 %v103, %s106
    %v109 = vpop.permute.xlu0 %108
    %110 = vrot.lane.b32.xlu0 %v104, %s106
    %v111 = vpop.permute.xlu0 %110
    %v112 = vstv %s106
    %vm113 = vcmp.lt.s32.totalorder %v37, %v112
    %v114 = vsel %vm113, %v109, %v111
    %v115 = vsel %vm113, %v111, %v109
    %s116 = sand.u32 %s107, 1
    %v117 = vstv %s116
    %vm118 = vcmp.ne.s32.totalorder %v117, 0
    %v119 = vsel %vm118, %v114, %v115
    %v120 = vstv %s99
    %vm121 = vcmp.ge.s32.totalorder %v37, %v120
    %v122 = vstv %s100
    %vm123 = vcmp.lt.s32.totalorder %v37, %v122
    %vm124 = vmand %vm121, %vm123
    %v125 = vsel %vm124, %v119, 0
    %v126 = vcvt.s32.f32 %v125
    %127 = vst [vmem:[#allocation7 + $0x2] sm:$0x1] %v126
    %s128 = sadd.s32 %s38, 3
    %s129 = sld [smem:[#allocation3 + %s128]]
    %s130 = sld [smem:[#allocation4 + %s128]]
    %s131 = sld [smem:[#allocation6 + %s128]]
    %v132 = vld [vmem:[%s4] sm:$0x3]
    %v133 = vperm.slane %v132, 0
    %v134 = vperm.slane %v132, 1
    %s135 = sand.u32 %s131, 255
    %s136 = sand.u32 %s135, 127
    %s137 = sshrl.u32 %s135, 7
    %138 = vrot.lane.b32.xlu0 %v133, %s136
    %v139 = vpop.permute.xlu0 %138
    %140 = vrot.lane.b32.xlu0 %v134, %s136
    %v141 = vpop.permute.xlu0 %140
    %v142 = vstv %s136
    %vm143 = vcmp.lt.s32.totalorder %v37, %v142
    %v144 = vsel %vm143, %v139, %v141
    %v145 = vsel %vm143, %v141, %v139
    %s146 = sand.u32 %s137, 1
    %v147 = vstv %s146
    %vm148 = vcmp.ne.s32.totalorder %v147, 0
    %v149 = vsel %vm148, %v144, %v145
    %v150 = vstv %s129
    %vm151 = vcmp.ge.s32.totalorder %v37, %v150
    %v152 = vstv %s130
    %vm153 = vcmp.lt.s32.totalorder %v37, %v152
    %vm154 = vmand %vm151, %vm153
    %v155 = vsel %vm154, %v149, 0
    %v156 = vcvt.s32.f32 %v155
    %157 = vst [vmem:[#allocation7 + $0x3] sm:$0x1] %v156
    %s158 = sadd.s32 %s38, 4
    %s159 = sld [smem:[#allocation3 + %s158]]
    %s160 = sld [smem:[#allocation4 + %s158]]
    %s161 = sld [smem:[#allocation6 + %s158]]
    %v162 = vld [vmem:[%s4] sm:$0x3]
    %v163 = vperm.slane %v162, 0
    %v164 = vperm.slane %v162, 1
    %s165 = sand.u32 %s161, 255
    %s166 = sand.u32 %s165, 127
    %s167 = sshrl.u32 %s165, 7
    %168 = vrot.lane.b32.xlu0 %v163, %s166
    %v169 = vpop.permute.xlu0 %168
    %170 = vrot.lane.b32.xlu0 %v164, %s166
    %v171 = vpop.permute.xlu0 %170
    %v172 = vstv %s166
    %vm173 = vcmp.lt.s32.totalorder %v37, %v172
    %v174 = vsel %vm173, %v169, %v171
    %v175 = vsel %vm173, %v171, %v169
    %s176 = sand.u32 %s167, 1
    %v177 = vstv %s176
    %vm178 = vcmp.ne.s32.totalorder %v177, 0
    %v179 = vsel %vm178, %v174, %v175
    %v180 = vstv %s159
    %vm181 = vcmp.ge.s32.totalorder %v37, %v180
    %v182 = vstv %s160
    %vm183 = vcmp.lt.s32.totalorder %v37, %v182
    %vm184 = vmand %vm181, %vm183
    %v185 = vsel %vm184, %v179, 0
    %v186 = vcvt.s32.f32 %v185
    %187 = vst [vmem:[#allocation7 + $0x4] sm:$0x1] %v186
    %s188 = sadd.s32 %s38, 5
    %s189 = sld [smem:[#allocation3 + %s188]]
    %s190 = sld [smem:[#allocation4 + %s188]]
    %s191 = sld [smem:[#allocation6 + %s188]]
    %v192 = vld [vmem:[%s4] sm:$0x3]
    %v193 = vperm.slane %v192, 0
    %v194 = vperm.slane %v192, 1
    %s195 = sand.u32 %s191, 255
    %s196 = sand.u32 %s195, 127
    %s197 = sshrl.u32 %s195, 7
    %198 = vrot.lane.b32.xlu0 %v193, %s196
    %v199 = vpop.permute.xlu0 %198
    %200 = vrot.lane.b32.xlu0 %v194, %s196
    %v201 = vpop.permute.xlu0 %200
    %v202 = vstv %s196
    %vm203 = vcmp.lt.s32.totalorder %v37, %v202
    %v204 = vsel %vm203, %v199, %v201
    %v205 = vsel %vm203, %v201, %v199
    %s206 = sand.u32 %s197, 1
    %v207 = vstv %s206
    %vm208 = vcmp.ne.s32.totalorder %v207, 0
    %v209 = vsel %vm208, %v204, %v205
    %v210 = vstv %s189
    %vm211 = vcmp.ge.s32.totalorder %v37, %v210
    %v212 = vstv %s190
    %vm213 = vcmp.lt.s32.totalorder %v37, %v212
    %vm214 = vmand %vm211, %vm213
    %v215 = vsel %vm214, %v209, 0
    %v216 = vcvt.s32.f32 %v215
    %217 = vst [vmem:[#allocation7 + $0x5] sm:$0x1] %v216
    %s218 = sadd.s32 %s38, 6
    %s219 = sld [smem:[#allocation3 + %s218]]
    %s220 = sld [smem:[#allocation4 + %s218]]
    %s221 = sld [smem:[#allocation6 + %s218]]
    %v222 = vld [vmem:[%s4] sm:$0x3]
    %v223 = vperm.slane %v222, 0
    %v224 = vperm.slane %v222, 1
    %s225 = sand.u32 %s221, 255
    %s226 = sand.u32 %s225, 127
    %s227 = sshrl.u32 %s225, 7
    %228 = vrot.lane.b32.xlu0 %v223, %s226
    %v229 = vpop.permute.xlu0 %228
    %230 = vrot.lane.b32.xlu0 %v224, %s226
    %v231 = vpop.permute.xlu0 %230
    %v232 = vstv %s226
    %vm233 = vcmp.lt.s32.totalorder %v37, %v232
    %v234 = vsel %vm233, %v229, %v231
    %v235 = vsel %vm233, %v231, %v229
    %s236 = sand.u32 %s227, 1
    %v237 = vstv %s236
    %vm238 = vcmp.ne.s32.totalorder %v237, 0
    %v239 = vsel %vm238, %v234, %v235
    %v240 = vstv %s219
    %vm241 = vcmp.ge.s32.totalorder %v37, %v240
    %v242 = vstv %s220
    %vm243 = vcmp.lt.s32.totalorder %v37, %v242
    %vm244 = vmand %vm241, %vm243
    %v245 = vsel %vm244, %v239, 0
    %v246 = vcvt.s32.f32 %v245
    %247 = vst [vmem:[#allocation7 + $0x6] sm:$0x1] %v246
    %s248 = sadd.s32 %s38, 7
    %s249 = sld [smem:[#allocation3 + %s248]]
    %s250 = sld [smem:[#allocation4 + %s248]]
    %s251 = sld [smem:[#allocation6 + %s248]]
    %v252 = vld [vmem:[%s4] sm:$0x3]
    %v253 = vperm.slane %v252, 0
    %v254 = vperm.slane %v252, 1
    %s255 = sand.u32 %s251, 255
    %s256 = sand.u32 %s255, 127
    %s257 = sshrl.u32 %s255, 7
    %258 = vrot.lane.b32.xlu0 %v253, %s256
    %v259 = vpop.permute.xlu0 %258
    %260 = vrot.lane.b32.xlu0 %v254, %s256
    %v261 = vpop.permute.xlu0 %260
    %v262 = vstv %s256
    %vm263 = vcmp.lt.s32.totalorder %v37, %v262
    %v264 = vsel %vm263, %v259, %v261
    %v265 = vsel %vm263, %v261, %v259
    %s266 = sand.u32 %s257, 1
    %v267 = vstv %s266
    %vm268 = vcmp.ne.s32.totalorder %v267, 0
    %v269 = vsel %vm268, %v264, %v265
    %v270 = vstv %s249
    %vm271 = vcmp.ge.s32.totalorder %v37, %v270
    %v272 = vstv %s250
    %vm273 = vcmp.lt.s32.totalorder %v37, %v272
    %vm274 = vmand %vm271, %vm273
    %v275 = vsel %vm274, %v269, 0
    %v276 = vcvt.s32.f32 %v275
    %277 = vst [vmem:[#allocation7 + $0x7] sm:$0x1] %v276
    // Predicated region
    $region6: #{tpu_custom_call.1} parent=1 // pred_check
      _
    $region7: #{tpu_custom_call.1} parent=1 // pred_check_branch
      %279 = sbr.rel (0) target = $region9
    $region8: #{tpu_custom_call.1} parent=1 // pred_region
      %281 = vsyncadd [#allocation8], 64
      %s282 = sshll.u32 [#allocation7], 4
      %s283 = int_to_ptr.vmem [resolvable:$true] %s282
      %s284 = sshll.u32 %s5, 4
      %s285 = int_to_ptr.hbm [resolvable:$true] %s284
      %290 = dma.vmem_to_hbm [thread:$0]  %s283, 64, %s285, [#allocation8], 64, 64, 4
    $region9: #{tpu_custom_call.1} parent=1 // pred_fallthru
      _
    // Predicated region
    $region10: #{tpu_custom_call.1} parent=1 // pred_check
      _
    $region11: #{tpu_custom_call.1} parent=1 // pred_check_branch
      %292 = sbr.rel (0) target = $region13
    $region12: #{tpu_custom_call.1} parent=1 // pred_region
      %294 = dma.done [#allocation8], 128
    $region13: #{tpu_custom_call.1} parent=1 // pred_fallthru
      _
    %295 = vsyncpa [#allocation8], 1

</llo_original>
